<compile_context>
chip_gen: v5e
topology: v5e:2x2
jax: 0.10.0
libtpu: 0.0.40
codegen_flags: <defaults>
</compile_context>

<pallas_src>
import functools

import numpy as np
import jax
import jax.numpy as jnp
from jax.experimental import pallas as pl
from jax.experimental.pallas import tpu as pltpu


def _round_up(x, m):
    return ((x + m - 1) // m) * m


# ---------------------------------------------------------------------------
# Pallas kernels
# ---------------------------------------------------------------------------
def _matmul_bias_act_kernel(x_ref, w_ref, b_ref, o_ref, acc_ref, *, slope):
    """Tiled out = leaky_relu(x @ w + b) with K-reduction grid axis (axis 2)."""
    @pl.when(pl.program_id(2) == 0)
    def _():
        acc_ref[...] = jnp.zeros_like(acc_ref)

    acc_ref[...] += jnp.dot(x_ref[...], w_ref[...],
                            preferred_element_type=jnp.float32)

    @pl.when(pl.program_id(2) == pl.num_programs(2) - 1)
    def _():
        acc = acc_ref[...] + b_ref[...]
        if slope is not None:
            acc = jnp.where(acc >= 0.0, acc, slope * acc)
        o_ref[...] = acc


def _self_attention_kernel(x_ref, wq_ref, wk_ref, wv_ref,
                           bq_ref, bk_ref, bv_ref, g_ref,
                           out_ref, attn_ref):
    """SAGAN self-attention, whole batch in one call.

    x_ref: (B, N, C)  (NHWC flattened -> no transposes needed anywhere).
    Produces out (B, N, C) and attention_map (B, N, N) (== torch's attention_map).
    """
    x = x_ref[...]                                                      # (B, N, C)
    # projections: q/k -> (B, N, C//8), v -> (B, N, C); biases broadcast over (B, N)
    q = jnp.einsum('bnc,oc->bno', x, wq_ref[...],
                   preferred_element_type=jnp.float32) + bq_ref[...]
    k = jnp.einsum('bnc,oc->bno', x, wk_ref[...],
                   preferred_element_type=jnp.float32) + bk_ref[...]
    v = jnp.einsum('bnc,oc->bno', x, wv_ref[...],
                   preferred_element_type=jnp.float32) + bv_ref[...]
    # st[b, j, i] = S[b, i, j]  (torch: S = bmm(proj_query, proj_key))
    st = jnp.einsum('bjo,bio->bji', k, q, preferred_element_type=jnp.float32)
    # softmax over torch dim=-2 of S  ==  softmax over the last (lane) axis of st.
    m = jnp.max(st, axis=-1, keepdims=True)
    e = jnp.exp(st - m)
    inv = pl.reciprocal(jnp.sum(e, axis=-1, keepdims=True), approx=True)
    attn = e * inv                                   # == attention_map (B, N, N)
    # o[b, j, c] = sum_i attention_map[b, j, i] * v[b, i, c]
    o = jnp.einsum('bji,bic->bjc', attn, v, preferred_element_type=jnp.float32)
    out_ref[...] = x + g_ref[0, 0] * o
    attn_ref[...] = attn


# ---------------------------------------------------------------------------
# im2col glue (plain JAX slicing)
# ---------------------------------------------------------------------------
# TODO(synk): fuse patch extraction into the conv kernel via manual DMA to avoid the
# kh*kw HBM amplification of materialized im2col patches (matters most on v5e).
def _im2col(x_nhwc, kh, kw, stride, pad):
    B, H, W, Cin = x_nhwc.shape
    xp = jnp.pad(x_nhwc, ((0, 0), (pad, pad), (pad, pad), (0, 0)))
    Hp, Wp = H + 2 * pad, W + 2 * pad
    OH = (Hp - kh) // stride + 1
    OW = (Wp - kw) // stride + 1
    cols = []
    for i in range(kh):
        for j in range(kw):
            cols.append(xp[:, i:i + stride * (OH - 1) + 1:stride,
                            j:j + stride * (OW - 1) + 1:stride, :])
    patches = jnp.stack(cols, axis=3)                   # (B, OH, OW, kh*kw, Cin)
    patches = jnp.transpose(patches, (0, 1, 2, 4, 3))   # (B, OH, OW, Cin, kh*kw)
    return patches.reshape(B * OH * OW, Cin * kh * kw), OH, OW


# ---------------------------------------------------------------------------
# Wrappers
# ---------------------------------------------------------------------------
def conv2d_pallas(x_nhwc, w_oihw, bias, stride, pad, slope=None):
    """Strided Conv2d (+ optional fused LeakyReLU) as im2col + tiled Pallas matmul.

    bf16 operands, f32 accumulation / output.
    """
    B = x_nhwc.shape[0]
    Cout, Cin, kh, kw = w_oihw.shape
    patches, OH, OW = _im2col(x_nhwc.astype(jnp.bfloat16), kh, kw, stride, pad)
    M, K = patches.shape
    w2 = w_oihw.reshape(Cout, K).T.astype(jnp.bfloat16)        # (K, Cout)
    b2 = bias.astype(jnp.float32).reshape(1, Cout)

    # ---- tiling (keeps every buffer ~<=1 MiB so 2-deep pipelining survives v7x) ----
    tm = 256 if M >= 256 else _round_up(M, 8)
    Mp = _round_up(M, tm)
    if Cout >= 256:
        tn = 256
    elif Cout >= 128:
        tn = 128
    else:
        tn = Cout                                              # full (small) width
    Np = _round_up(Cout, tn)
    if K > 1024:
        tk = 1024
        Kp = _round_up(K, tk)
    else:
        tk = K
        Kp = K

    if Mp != M or Kp != K:
        patches = jnp.pad(patches, ((0, Mp - M), (0, Kp - K)))
    if Kp != K or Np != Cout:
        w2 = jnp.pad(w2, ((0, Kp - K), (0, Np - Cout)))
    if Np != Cout:
        b2 = jnp.pad(b2, ((0, 0), (0, Np - Cout)))

    grid = (Mp // tm, Np // tn, Kp // tk)          # M, Cout parallel; K reduction last

    cost = pl.CostEstimate(
        flops=2 * M * K * Cout,
        transcendentals=0,
        bytes_accessed=Mp * Kp * 2 + Kp * Np * 2 + Mp * Np * 4 + Np * 4)

    out = pl.pallas_call(
        functools.partial(_matmul_bias_act_kernel, slope=slope),
        out_shape=jax.ShapeDtypeStruct((Mp, Np), jnp.float32),
        grid=grid,
        in_specs=[pl.BlockSpec((tm, tk), lambda i, j, k: (i, k)),
                  pl.BlockSpec((tk, tn), lambda i, j, k: (k, j)),
                  pl.BlockSpec((1, tn), lambda i, j, k: (0, j))],
        out_specs=pl.BlockSpec((tm, tn), lambda i, j, k: (i, j)),
        scratch_shapes=[pltpu.VMEM((tm, tn), jnp.float32)],
        compiler_params=pltpu.CompilerParams(
            dimension_semantics=("parallel", "parallel", "arbitrary"),
            vmem_limit_bytes=32 * 1024 * 1024),
        cost_estimate=cost,
    )(patches, w2, b2)
    return out[:M, :Cout].reshape(B, OH, OW, Cout)


def conv2d_head_plain(x_nhwc, w_oihw, bias, stride, pad):
    """Final Cout=1 conv head: tiny -> plain JAX matmul (no Pallas launch)."""
    B = x_nhwc.shape[0]
    Cout = w_oihw.shape[0]
    kh, kw = w_oihw.shape[2], w_oihw.shape[3]
    patches, OH, OW = _im2col(x_nhwc, kh, kw, stride, pad)
    w2 = w_oihw.reshape(Cout, -1)
    y = jnp.dot(patches, w2.T, precision=jax.lax.Precision.HIGHEST) + bias[None, :]
    return y.reshape(B, OH, OW, Cout)


def self_attention_pallas(x_nhwc, sp):
    """x_nhwc: (B, H, W, C).  Returns (out (B,H,W,C), attention_map (B,N,N))."""
    B, H, W, C = x_nhwc.shape
    N = H * W
    C8 = sp['wq'].shape[0]
    x2 = x_nhwc.reshape(B, N, C).astype(jnp.float32)
    vspec = pl.BlockSpec(memory_space=pltpu.MemorySpace.VMEM)
    out2, attn = pl.pallas_call(
        _self_attention_kernel,
        out_shape=(jax.ShapeDtypeStruct((B, N, C), jnp.float32),
                   jax.ShapeDtypeStruct((B, N, N), jnp.float32)),
        in_specs=[vspec] * 8,
        out_specs=(vspec, vspec),
    )(x2, sp['wq'], sp['wk'], sp['wv'],
      sp['bq'].reshape(1, 1, C8), sp['bk'].reshape(1, 1, C8),
      sp['bv'].reshape(1, 1, C), sp['gamma'].reshape(1, 1))
    return out2.reshape(B, H, W, C), attn


def discriminator_forward(x_nchw, p, big_image):
    x = jnp.transpose(x_nchw, (0, 2, 3, 1)).astype(jnp.float32)      # NHWC
    x = conv2d_pallas(x, p['l1_w'], p['l1_b'], 4, 2, slope=0.2)
    if big_image:
        x = conv2d_pallas(x, p['l2_w'], p['l2_b'], 4, 2, slope=0.2)
    else:
        x = conv2d_pallas(x, p['l2_w'], p['l2_b'], 2, 1, slope=0.2)
    x = conv2d_pallas(x, p['l3_w'], p['l3_b'], 2, 1, slope=0.2)
    x, attn1 = self_attention_pallas(x, p['sa1'])
    x = conv2d_pallas(x, p['l4_w'], p['l4_b'], 2, 1, slope=0.2)
    x, attn2 = self_attention_pallas(x, p['sa2'])
    x = conv2d_head_plain(x, p['l5_w'], p['l5_b'], 1, 0)              # layer5, no act
    return x.reshape(-1), attn1, attn2


# ---------------------------------------------------------------------------
# Deterministic parameter init (synthetic; PyTorch-style shapes) + spectral norm
# ---------------------------------------------------------------------------
def _conv_init(key, cout, cin, kh, kw):
    kw_key, kb_key = jax.random.split(key)
    bound = 1.0 / np.sqrt(cin * kh * kw)
    w = jax.random.uniform(kw_key, (cout, cin, kh, kw), jnp.float32, -bound, bound)
    b = jax.random.uniform(kb_key, (cout,), jnp.float32, -bound, bound)
    return w, b


def _spectral_normalize(w, n_iter=30):
    # nn.utils.spectral_norm: divide the weight by its largest singular value
    # (power iteration on W.view(out, -1)); parameter-setup glue.
    w2d = w.reshape(w.shape[0], -1)
    v = jnp.ones((w2d.shape[1],), jnp.float32) / jnp.sqrt(w2d.shape[1])
    u = jnp.ones((w2d.shape[0],), jnp.float32) / jnp.sqrt(w2d.shape[0])
    for _ in range(n_iter):
        u = w2d @ v
        u = u / (jnp.linalg.norm(u) + 1e-12)
        v = w2d.T @ u
        v = v / (jnp.linalg.norm(v) + 1e-12)
    sigma = u @ (w2d @ v)
    return w / sigma


def _sa_init(key, c):
    c8 = c // 8
    ks = jax.random.split(key, 6)

    def lin(k, cout, cin):
        bound = 1.0 / np.sqrt(cin)
        return jax.random.uniform(k, (cout, cin), jnp.float32, -bound, bound)

    def bias(k, cout, cin):
        bound = 1.0 / np.sqrt(cin)
        return jax.random.uniform(k, (cout,), jnp.float32, -bound, bound)

    return dict(wq=lin(ks[0], c8, c), bq=bias(ks[1], c8, c),
                wk=lin(ks[2], c8, c), bk=bias(ks[3], c8, c),
                wv=lin(ks[4], c, c), bv=bias(ks[5], c, c),
                gamma=jnp.zeros((1,), jnp.float32))


def init_discriminator(key, big_image, image_size=None):
    if image_size is None:
        image_size = 256 if big_image else 128
    ks = jax.random.split(key, 7)
    p = {}
    w, b = _conv_init(ks[0], image_size, 3, 8, 8)
    p['l1_w'], p['l1_b'] = _spectral_normalize(w), b
    if big_image:
        w, b = _conv_init(ks[1], image_size * 2, image_size, 8, 8)
    else:
        w, b = _conv_init(ks[1], image_size * 2, image_size, 4, 4)
    p['l2_w'], p['l2_b'] = _spectral_normalize(w), b
    w, b = _conv_init(ks[2], image_size * 4, image_size * 2, 4, 4)
    p['l3_w'], p['l3_b'] = _spectral_normalize(w), b
    p['sa1'] = _sa_init(ks[3], image_size * 4)
    w, b = _conv_init(ks[4], image_size * 8, image_size * 4, 4, 4)
    p['l4_w'], p['l4_b'] = _spectral_normalize(w), b
    p['sa2'] = _sa_init(ks[5], image_size * 8)
    w, b = _conv_init(ks[6], 1, image_size * 8, 4, 4)
    p['l5_w'], p['l5_b'] = w, b                       # layer5: no spectral norm
    return p


# ---------------------------------------------------------------------------
# Pure-JAX reference (f32, HIGHEST precision) for correctness check
# ---------------------------------------------------------------------------
def _leaky(x, s=0.2):
    return jnp.where(x >= 0, x, s * x)


def _conv_ref(x, w, b, stride, pad):
    y = jax.lax.conv_general_dilated(
        x, w, (stride, stride), [(pad, pad), (pad, pad)],
        dimension_numbers=('NCHW', 'OIHW', 'NCHW'),
        precision=jax.lax.Precision.HIGHEST)
    return y + b[None, :, None, None]


def _sa_ref(x, sp):
    B, C, H, W = x.shape
    N = H * W
    hi = jax.lax.Precision.HIGHEST
    xf = x.reshape(B, C, N)
    q = jnp.einsum('oc,bcn->bon', sp['wq'], xf, precision=hi) + sp['bq'][None, :, None]
    k = jnp.einsum('oc,bcn->bon', sp['wk'], xf, precision=hi) + sp['bk'][None, :, None]
    v = jnp.einsum('oc,bcn->bon', sp['wv'], xf, precision=hi) + sp['bv'][None, :, None]
    S = jnp.einsum('bci,bcj->bij', q, k, precision=hi)
    A_T = jax.nn.softmax(S, axis=-2)
    o = jnp.einsum('bci,bij->bcj', v, A_T, precision=hi)
    out = xf + sp['gamma'][0] * o
    return out.reshape(B, C, H, W), jnp.transpose(A_T, (0, 2, 1))


def forward_ref(x, p, big_image):
    y = _leaky(_conv_ref(x, p['l1_w'], p['l1_b'], 4, 2))
    y = _leaky(_conv_ref(y, p['l2_w'], p['l2_b'],
                         4 if big_image else 2, 2 if big_image else 1))
    y = _leaky(_conv_ref(y, p['l3_w'], p['l3_b'], 2, 1))
    y, a1 = _sa_ref(y, p['sa1'])
    y = _leaky(_conv_ref(y, p['l4_w'], p['l4_b'], 2, 1))
    y, a2 = _sa_ref(y, p['sa2'])
    y = _conv_ref(y, p['l5_w'], p['l5_b'], 1, 0)
    return y.reshape(-1), a1, a2


# ---------------------------------------------------------------------------
if __name__ == "__main__":
    key = jax.random.PRNGKey(0)
    pkey, xkey = jax.random.split(key)

    big_image = False
    # NOTE: channel width reduced from PyTorch's default 128 to 32 to keep the demo small
    # and fast; pass image_size=None for the faithful widths (same architecture/semantics).
    params = init_discriminator(pkey, big_image, image_size=32)

    # 128x128 is the minimum spatial size the fixed conv stack (strides 4,2,2,2 + 4x4
    # valid head) supports, so the input is (B=2, C=3, H=128, W=128) NCHW like PyTorch.
    x = jax.random.normal(xkey, (2, 3, 128, 128), jnp.float32)

    out, attn1, attn2 = discriminator_forward(x, params, big_image)
    jax.block_until_ready((out, attn1, attn2))

    ref_out, ref_a1, ref_a2 = forward_ref(x, params, big_image)
    # Conv path runs with bf16 operands + f32 accumulation, so tolerances are slightly
    # looser than a pure-f32 comparison would allow.
    np.testing.assert_allclose(np.asarray(out), np.asarray(ref_out), rtol=5e-2, atol=5e-3)
    np.testing.assert_allclose(np.asarray(attn1), np.asarray(ref_a1), rtol=3e-2, atol=3e-3)
    np.testing.assert_allclose(np.asarray(attn2), np.asarray(ref_a2), rtol=3e-2, atol=3e-3)
    assert out.shape == (2,)
    assert attn1.shape == (2, 64, 64)   # N = 8*8 at sa1
    assert attn2.shape == (2, 16, 16)   # N = 4*4 at sa2
    print("KERNEL_OK")
</pallas_src>

<mosaic_0001>
module attributes {stable_mosaic.version = 11 : i64} {
  func.func @_matmul_bias_act_kernel(%arg0: i32, %arg1: i32, %arg2: i32, %arg3: memref<256x192xbf16, #tpu.memory_space<vmem>>, %arg4: memref<192x32xbf16, #tpu.memory_space<vmem>>, %arg5: memref<1x32xf32, #tpu.memory_space<vmem>>, %arg6: memref<256x32xf32, #tpu.memory_space<vmem>>, %arg7: memref<256x32xf32, #tpu.memory_space<vmem>>) attributes {dimension_semantics = [#tpu.dimension_semantics<parallel>, #tpu.dimension_semantics<parallel>, #tpu.dimension_semantics<arbitrary>], iteration_bounds = array<i64: 8, 1, 1>, scalar_prefetch = 0 : i64, scratch_operands = 1 : i64, tpu.core_type = #tpu.core_type<tc>, window_params = [{transform_indices = @transform_0, window_bounds = array<i64: 256, 192>}, {transform_indices = @transform_1, window_bounds = array<i64: 192, 32>}, {transform_indices = @transform_2, window_bounds = array<i64: 1, 32>}, {transform_indices = @transform_3, window_bounds = array<i64: 256, 32>}]} {
    %c0_i32 = arith.constant 0 : i32
    %0 = arith.cmpi eq, %arg2, %c0_i32 : i32
    %1 = arith.extui %0 : i1 to i32
    %c0_i32_0 = arith.constant 0 : i32
    %2 = arith.cmpi ne, %1, %c0_i32_0 : i32
    scf.if %2 {
      %cst_10 = arith.constant 0.000000e+00 : f32
      %12 = vector.broadcast %cst_10 : f32 to vector<256x32xf32>
      %c0_11 = arith.constant 0 : index
      %c0_12 = arith.constant 0 : index
      %13 = vector.load %arg7[%c0_11, %c0_12] : memref<256x32xf32, #tpu.memory_space<vmem>>, vector<256x32xf32>
      tpu.vector_store %arg7[%c0_11, %c0_12], %12 {strides = array<i32>} : memref<256x32xf32, #tpu.memory_space<vmem>>, vector<256x32xf32>,
    } else {
    }
    %c0 = arith.constant 0 : index
    %c0_1 = arith.constant 0 : index
    %3 = vector.load %arg7[%c0, %c0_1] : memref<256x32xf32, #tpu.memory_space<vmem>>, vector<256x32xf32>
    %c0_2 = arith.constant 0 : index
    %c0_3 = arith.constant 0 : index
    %4 = vector.load %arg3[%c0_2, %c0_3] : memref<256x192xbf16, #tpu.memory_space<vmem>>, vector<256x192xbf16>
    %c0_4 = arith.constant 0 : index
    %c0_5 = arith.constant 0 : index
    %5 = vector.load %arg4[%c0_4, %c0_5] : memref<192x32xbf16, #tpu.memory_space<vmem>>, vector<192x32xbf16>
    %cst = arith.constant dense<0.000000e+00> : vector<256x32xf32>
    %6 = tpu.matmul %4, %5, %cst {dimension_numbers = #tpu.dot_dimension_numbers<[1], [0], [0], [1], [0, 0, 1, 1], [], []>} : vector<256x192xbf16>, vector<192x32xbf16>, vector<256x32xf32> -> vector<256x32xf32>
    %7 = arith.addf %3, %6 : vector<256x32xf32>
    %c0_6 = arith.constant 0 : index
    %c0_7 = arith.constant 0 : index
    %8 = vector.load %arg7[%c0_6, %c0_7] : memref<256x32xf32, #tpu.memory_space<vmem>>, vector<256x32xf32>
    tpu.vector_store %arg7[%c0_6, %c0_7], %7 {strides = array<i32>} : memref<256x32xf32, #tpu.memory_space<vmem>>, vector<256x32xf32>,
    %c0_i32_8 = arith.constant 0 : i32
    %9 = arith.cmpi eq, %arg2, %c0_i32_8 : i32
    %10 = arith.extui %9 : i1 to i32
    %c0_i32_9 = arith.constant 0 : i32
    %11 = arith.cmpi ne, %10, %c0_i32_9 : i32
    scf.if %11 {
      %c0_10 = arith.constant 0 : index
      %c0_11 = arith.constant 0 : index
      %12 = vector.load %arg7[%c0_10, %c0_11] : memref<256x32xf32, #tpu.memory_space<vmem>>, vector<256x32xf32>
      %c0_12 = arith.constant 0 : index
      %c0_13 = arith.constant 0 : index
      %13 = vector.load %arg5[%c0_12, %c0_13] : memref<1x32xf32, #tpu.memory_space<vmem>>, vector<1x32xf32>
      %14 = vector.broadcast %13 : vector<1x32xf32> to vector<256x32xf32>
      %15 = arith.addf %12, %14 : vector<256x32xf32>
      %cst_14 = arith.constant 0.000000e+00 : f32
      %16 = vector.broadcast %cst_14 : f32 to vector<256x32xf32>
      %17 = arith.cmpf oge, %15, %16 : vector<256x32xf32>
      %cst_15 = arith.constant 2.000000e-01 : f32
      %18 = vector.broadcast %cst_15 : f32 to vector<256x32xf32>
      %19 = arith.mulf %18, %15 : vector<256x32xf32>
      %20 = arith.select %17, %15, %19 : vector<256x32xi1>, vector<256x32xf32>
      %c0_16 = arith.constant 0 : index
      %c0_17 = arith.constant 0 : index
      %21 = vector.load %arg6[%c0_16, %c0_17] : memref<256x32xf32, #tpu.memory_space<vmem>>, vector<256x32xf32>
      tpu.vector_store %arg6[%c0_16, %c0_17], %20 {strides = array<i32>} : memref<256x32xf32, #tpu.memory_space<vmem>>, vector<256x32xf32>,
    } else {
    }
    return
  }
  func.func @transform_0(%arg0: i32, %arg1: i32, %arg2: i32) -> (i32, i32) {
    %c0_i32 = arith.constant 0 : i32
    return %arg0, %arg2 : i32, i32
  }
  func.func @transform_1(%arg0: i32, %arg1: i32, %arg2: i32) -> (i32, i32) {
    %c0_i32 = arith.constant 0 : i32
    return %arg2, %arg1 : i32, i32
  }
  func.func @transform_2(%arg0: i32, %arg1: i32, %arg2: i32) -> (i32, i32) {
    %c0_i32 = arith.constant 0 : i32
    %c0_i32_0 = arith.constant 0 : i32
    return %c0_i32, %arg1 : i32, i32
  }
  func.func @transform_3(%arg0: i32, %arg1: i32, %arg2: i32) -> (i32, i32) {
    %c0_i32 = arith.constant 0 : i32
    return %arg0, %arg1 : i32, i32
  }
}

</mosaic_0001>

<llo_original>
// kernel: tpu_custom_call.1
$region0: #{tpu_custom_call.1}
  #allocation0 [shape = 'u32[]', space=smem, size = 0x4, offset = 0x4, fixed_abs, tag = 'smem constant byte address 0x4 - core index']
  #allocation1 [shape = 'u32[72,128]{1,0:T(1,128)}', space=vmem, size = 0x9000, scoped, tag = 'internal scratch']
  #allocation2 [shape = 'f32[256,32]{1,0:T(8,128)}', space=vmem, size = 0x20000, scoped, tag = 'scratch operand']
  %s0 = inlined_call_operand.vmem [shape: bf16[2048,192], index: 0, kind: input, shape index: {}]
  %s1 = inlined_call_operand.vmem [shape: bf16[192,32], index: 1, kind: input, shape index: {}]
  %s2 = inlined_call_operand.vmem [shape: f32[1,32], index: 2, kind: input, shape index: {}]
  %s3 = inlined_call_operand.vmem [shape: f32[2048,32], index: 3, kind: output, shape index: {}]
  %s4 = sld [smem:[#allocation0]]
  $region53: #{tpu_custom_call.1} parent=0
    _
  %s6 = ssub.s32 1, %s4
  %s7 = scalar_select 0, %s6, %s4
  loop: start=0, step=1, limit=10
  $region2: #{tpu_custom_call.1} parent=0 // loop_pre_header
    _
  $region3: #{tpu_custom_call.1} parent=0 // loop_header
    %s9 = sphi 0, %s13
    %p10 = scmp.ge.s32.totalorder %s9, 10
    %s16 = sphi 0, %s35
    %s17 = sphi 0, %s31
    %s18 = sphi 0, %s27
    %s19 = sphi 0, %s16
    %s20 = sphi 0, %s17
    %s21 = sphi 0, %s18
    %s22 = sphi 0, %s19
    %s23 = sphi 0, %s20
    %s24 = sphi 0, %s21
    %s40 = sphi 0, %s42
    %s43 = sphi 0, %s40
    %s44 = sphi 0, %s43
    %s60 = sphi 0, %s44
    %s68 = sphi 0, %s70
    %s71 = sphi 0, %s68
    %s72 = sphi 0, %s71
    %s88 = sphi 0, %s72
    %s94 = sphi 0, %s96
    %s97 = sphi 0, %s94
    %s98 = sphi 0, %s97
    %s114 = sphi 0, %s98
    %s122 = sphi 0, %s124
    %s125 = sphi 0, %s122
    %s126 = sphi 0, %s125
    %s142 = sphi 0, %s126
  $region4: #{tpu_custom_call.1} parent=0 // loop_header_branch
    %12 = sbr.rel (%p10) target = $region8
  $region5: #{tpu_custom_call.1} parent=0 // loop_body
    %s14 = ssub.s32 %s9, 1
    %s15 = ssub.s32 %s9, 2
    %s25 = sadd.s32 1, %s18
    %p26 = scmp.ge.s32.totalorder %s25, 1
    %s27 = scalar_select %p26, 0, %s25
    %s28 = sadd.s32 1, %s17
    %s29 = scalar_select %p26, %s28, %s17
    %p30 = scmp.ge.s32.totalorder %s29, 1
    %s31 = scalar_select %p30, 0, %s29
    %s32 = sadd.s32 1, %s16
    %s33 = scalar_select %p30, %s32, %s16
    %p34 = scmp.ge.s32.totalorder %s33, 8
    %s35 = scalar_select %p34, 0, %s33
    %s36 = ssub.s32 %s16, %s35
    %s37 = ssub.s32 %s18, %s27
    %s38 = sor.u32 %s36, %s37
    %p39 = scmp.eq.s32.totalorder %s38, 0
    %s41 = sadd.s32 %s40, 1
    %s42 = scalar_select %p39, %s40, %s41
    %p45 = pneg %p39
    %p46 = scmp.eq.s32.totalorder %s9, 7
    %p47 = por %p45, %p46
    %p48 = scmp.ne.s32.totalorder %s40, %s43
    %p49 = scmp.eq.s32.totalorder %s9, 0
    %p50 = por %p48, %p49
    %p51 = scmp.ne.s32.totalorder %s40, %s43
    %p52 = scmp.eq.s32.totalorder %s14, 7
    %p53 = por %p51, %p52
    %p54 = scmp.ne.s32.totalorder %s43, %s44
    %p55 = scmp.eq.s32.totalorder %s14, 0
    %p56 = por %p54, %p55
    %p57 = scmp.ne.s32.totalorder %s43, %s44
    %p58 = scmp.eq.s32.totalorder %s15, 7
    %p59 = por %p57, %p58
    %p61 = scmp.ne.s32.totalorder %s44, %s60
    %p62 = scmp.eq.s32.totalorder %s15, 0
    %p63 = por %p61, %p62
    %s64 = ssub.s32 %s18, %s27
    %s65 = ssub.s32 %s17, %s31
    %s66 = sor.u32 %s64, %s65
    %p67 = scmp.eq.s32.totalorder %s66, 0
    %s69 = sadd.s32 %s68, 1
    %s70 = scalar_select %p67, %s68, %s69
    %p73 = pneg %p67
    %p74 = scmp.eq.s32.totalorder %s9, 7
    %p75 = por %p73, %p74
    %p76 = scmp.ne.s32.totalorder %s68, %s71
    %p77 = scmp.eq.s32.totalorder %s9, 0
    %p78 = por %p76, %p77
    %p79 = scmp.ne.s32.totalorder %s68, %s71
    %p80 = scmp.eq.s32.totalorder %s14, 7
    %p81 = por %p79, %p80
    %p82 = scmp.ne.s32.totalorder %s71, %s72
    %p83 = scmp.eq.s32.totalorder %s14, 0
    %p84 = por %p82, %p83
    %p85 = scmp.ne.s32.totalorder %s71, %s72
    %p86 = scmp.eq.s32.totalorder %s15, 7
    %p87 = por %p85, %p86
    %p89 = scmp.ne.s32.totalorder %s72, %s88
    %p90 = scmp.eq.s32.totalorder %s15, 0
    %p91 = por %p89, %p90
    %s92 = ssub.s32 %s17, %s31
    %p93 = scmp.eq.s32.totalorder %s92, 0
    %s95 = sadd.s32 %s94, 1
    %s96 = scalar_select %p93, %s94, %s95
    %p99 = pneg %p93
    %p100 = scmp.eq.s32.totalorder %s9, 7
    %p101 = por %p99, %p100
    %p102 = scmp.ne.s32.totalorder %s94, %s97
    %p103 = scmp.eq.s32.totalorder %s9, 0
    %p104 = por %p102, %p103
    %p105 = scmp.ne.s32.totalorder %s94, %s97
    %p106 = scmp.eq.s32.totalorder %s14, 7
    %p107 = por %p105, %p106
    %p108 = scmp.ne.s32.totalorder %s97, %s98
    %p109 = scmp.eq.s32.totalorder %s14, 0
    %p110 = por %p108, %p109
    %p111 = scmp.ne.s32.totalorder %s97, %s98
    %p112 = scmp.eq.s32.totalorder %s15, 7
    %p113 = por %p111, %p112
    %p115 = scmp.ne.s32.totalorder %s98, %s114
    %p116 = scmp.eq.s32.totalorder %s15, 0
    %p117 = por %p115, %p116
    %s118 = ssub.s32 %s16, %s35
    %s119 = ssub.s32 %s17, %s31
    %s120 = sor.u32 %s118, %s119
    %p121 = scmp.eq.s32.totalorder %s120, 0
    %s123 = sadd.s32 %s122, 1
    %s124 = scalar_select %p121, %s122, %s123
    %p127 = pneg %p121
    %p128 = scmp.eq.s32.totalorder %s9, 7
    %p129 = por %p127, %p128
    %p130 = scmp.ne.s32.totalorder %s122, %s125
    %p131 = scmp.eq.s32.totalorder %s9, 0
    %p132 = por %p130, %p131
    %p133 = scmp.ne.s32.totalorder %s122, %s125
    %p134 = scmp.eq.s32.totalorder %s14, 7
    %p135 = por %p133, %p134
    %p136 = scmp.ne.s32.totalorder %s125, %s126
    %p137 = scmp.eq.s32.totalorder %s14, 0
    %p138 = por %p136, %p137
    %p139 = scmp.ne.s32.totalorder %s125, %s126
    %p140 = scmp.eq.s32.totalorder %s15, 7
    %p141 = por %p139, %p140
    %p143 = scmp.ne.s32.totalorder %s126, %s142
    %p144 = scmp.eq.s32.totalorder %s15, 0
    %p145 = por %p143, %p144
    %p146 = scmp.le.s32.totalorder 1, %s9
    %p147 = scmp.lt.s32.totalorder %s9, 9
    %p148 = pnand %p146, %p147
    %p149 = pneg %p148
    // Predicated region
    $region9: #{tpu_custom_call.1} parent=5 // pred_check
      _
    $region10: #{tpu_custom_call.1} parent=5 // pred_check_branch
      %151 = sbr.rel (%p148) target = $region12
    $region11: #{tpu_custom_call.1} parent=5 // pred_region
      %s152 = ssub.s32 %s9, 1
      // Predicated region
      $region13: #{tpu_custom_call.1} parent=11 // pred_check
        %p153 = pneg %p84
      $region14: #{tpu_custom_call.1} parent=11 // pred_check_branch
        %155 = sbr.rel (%p153) target = $region16
      $region15: #{tpu_custom_call.1} parent=11 // pred_region
        %s156 = smul.u32 24, %s21
        %p157 = scmp.lt.s32.totalorder %s156, 23
        %s158 = scalar_select %p157, %s156, 23
        %p159 = scmp.lt.s32.totalorder %s20, 0
        %s160 = scalar_select %p159, %s20, 0
        %s161 = sadd.s32 %s160, %s158
        %s162 = smul.addr %s161, 4
        %s163 = scalar_lea.vmem %s1, %s162
        %s164 = smul.u32 24, %s21
      $region16: #{tpu_custom_call.1} parent=11 // pred_fallthru
        _
      // Predicated region
      $region17: #{tpu_custom_call.1} parent=11 // pred_check
        %p165 = pneg %p110
      $region18: #{tpu_custom_call.1} parent=11 // pred_check_branch
        %167 = sbr.rel (%p165) target = $region20
      $region19: #{tpu_custom_call.1} parent=11 // pred_region
        %p168 = scmp.lt.s32.totalorder %s20, 0
        %s169 = scalar_select %p168, %s20, 0
        %s170 = scalar_lea.vmem %s2, %s169
      $region20: #{tpu_custom_call.1} parent=11 // pred_fallthru
        _
    $region12: #{tpu_custom_call.1} parent=5 // pred_fallthru
      _
    %p171 = scmp.lt.s32.totalorder %s9, 8
    // Predicated region
    $region21: #{tpu_custom_call.1} parent=5 // pred_check
      %p172 = pneg %p171
    $region22: #{tpu_custom_call.1} parent=5 // pred_check_branch
      %174 = sbr.rel (%p172) target = $region24
    $region23: #{tpu_custom_call.1} parent=5 // pred_region
      // Predicated region
      $region25: #{tpu_custom_call.1} parent=23 // pred_check
        %p175 = pneg %p50
      $region26: #{tpu_custom_call.1} parent=23 // pred_check_branch
        %177 = sbr.rel (%p175) target = $region28
      $region27: #{tpu_custom_call.1} parent=23 // pred_region
        %s178 = smul.u32 32, %s16
        %s179 = smul.u32 2, %s18
        %p180 = scmp.lt.s32.totalorder %s178, 255
        %s181 = scalar_select %p180, %s178, 255
        %p182 = scmp.lt.s32.totalorder %s179, 1
        %s183 = scalar_select %p182, %s179, 1
        %s184 = smul.addr %s181, 2
        %s185 = sadd.s32 %s183, %s184
        %s186 = smul.addr %s185, 4
        %s187 = scalar_lea.vmem %s0, %s186
        %s188 = smul.u32 32, %s16
        %s189 = smul.u32 2, %s18
      $region28: #{tpu_custom_call.1} parent=23 // pred_fallthru
        _
    $region24: #{tpu_custom_call.1} parent=5 // pred_fallthru
      _
    %p190 = scmp.le.s32.totalorder 1, %s9
    %p191 = scmp.lt.s32.totalorder %s9, 9
    %p192 = pnand %p190, %p191
    %p193 = pneg %p192
    // Predicated region
    $region29: #{tpu_custom_call.1} parent=5 // pred_check
      _
    $region30: #{tpu_custom_call.1} parent=5 // pred_check_branch
      %195 = sbr.rel (%p192) target = $region32
    $region31: #{tpu_custom_call.1} parent=5 // pred_region
      %s196 = ssub.s32 %s9, 1
      %s197 = smul.u32 32, %s19
      %s198 = smul.u32 2, %s21
      %p199 = scmp.lt.s32.totalorder %s197, 255
      %s200 = scalar_select %p199, %s197, 255
      %p201 = scmp.lt.s32.totalorder %s198, 1
      %s202 = scalar_select %p201, %s198, 1
      %s203 = smul.addr %s200, 2
      %s204 = sadd.s32 %s202, %s203
      %s205 = smul.addr %s204, 4
      %s206 = scalar_lea.vmem %s0, %s205
      %p207 = pneg %p56
      %p208 = pneg %p53
      %s209 = smul.u32 24, %s21
      %p210 = scmp.lt.s32.totalorder %s209, 23
      %s211 = scalar_select %p210, %s209, 23
      %p212 = scmp.lt.s32.totalorder %s20, 0
      %s213 = scalar_select %p212, %s20, 0
      %s214 = sadd.s32 %s213, %s211
      %s215 = smul.addr %s214, 4
      %s216 = scalar_lea.vmem %s1, %s215
      %p217 = pneg %p84
      %p218 = pneg %p81
      %p219 = scmp.lt.s32.totalorder %s20, 0
      %s220 = scalar_select %p219, %s20, 0
      %s221 = scalar_lea.vmem %s2, %s220
      %p222 = pneg %p110
      %p223 = pneg %p107
      %p224 = pneg %p138
      %p225 = pneg %p135
      %s226 = smul.u32 32, %s19
      %p227 = scmp.lt.s32.totalorder %s226, 255
      %s228 = scalar_select %p227, %s226, 255
      %p229 = scmp.lt.s32.totalorder %s20, 0
      %s230 = scalar_select %p229, %s20, 0
      %s231 = sadd.s32 %s230, %s228
      %s232 = smul.addr %s231, 8
      %s233 = scalar_lea.vmem %s3, %s232
      %s234 = smul.u32 32, %s19
      %s235 = smul.u32 2, %s21
      %p236 = scmp.lt.s32.totalorder %s234, 255
      %s237 = scalar_select %p236, %s234, 255
      %p238 = scmp.lt.s32.totalorder %s235, 1
      %s239 = scalar_select %p238, %s235, 1
      %s240 = smul.addr %s237, 2
      %s241 = sadd.s32 %s239, %s240
      %s242 = smul.addr %s241, 4
      %s243 = scalar_lea.vmem %s0, %s242
      %s244 = smul.u32 32, %s19
      %s245 = smul.u32 2, %s21
      %s246 = smul.u32 24, %s21
      %p247 = scmp.lt.s32.totalorder %s246, 23
      %s248 = scalar_select %p247, %s246, 23
      %p249 = scmp.lt.s32.totalorder %s20, 0
      %s250 = scalar_select %p249, %s20, 0
      %s251 = sadd.s32 %s250, %s248
      %s252 = smul.addr %s251, 4
      %s253 = scalar_lea.vmem %s1, %s252
      %s254 = smul.u32 24, %s21
      %p255 = scmp.lt.s32.totalorder %s20, 0
      %s256 = scalar_select %p255, %s20, 0
      %s257 = scalar_lea.vmem %s2, %s256
      %s258 = smul.u32 32, %s19
      %p259 = scmp.lt.s32.totalorder %s258, 255
      %s260 = scalar_select %p259, %s258, 255
      %p261 = scmp.lt.s32.totalorder %s20, 0
      %s262 = scalar_select %p261, %s20, 0
      %s263 = sadd.s32 %s262, %s260
      %s264 = smul.addr %s263, 8
      %s265 = scalar_lea.vmem %s3, %s264
      %s266 = smul.u32 32, %s19
      %p268 = scmp.eq.s32.totalorder %s21, 0
      // Predicated region
      $region33: #{tpu_custom_call.1} parent=31 // pred_check
        %p269 = pneg %p268
      $region34: #{tpu_custom_call.1} parent=31 // pred_check_branch
        %271 = sbr.rel (%p269) target = $region36
      $region35: #{tpu_custom_call.1} parent=31 // pred_region
        %vm272 = vcmask 261120
        %273 = vst.msk [vmem:[#allocation2] sm:$0xff] %vm272, 0.0
        %274 = vst.msk [vmem:[#allocation2 + $0x8] sm:$0xff] %vm272, 0.0
        %275 = vst.msk [vmem:[#allocation2 + $0x10] sm:$0xff] %vm272, 0.0
        %276 = vst.msk [vmem:[#allocation2 + $0x18] sm:$0xff] %vm272, 0.0
        %277 = vst.msk [vmem:[#allocation2 + $0x20] sm:$0xff] %vm272, 0.0
        %278 = vst.msk [vmem:[#allocation2 + $0x28] sm:$0xff] %vm272, 0.0
        %279 = vst.msk [vmem:[#allocation2 + $0x30] sm:$0xff] %vm272, 0.0
        %280 = vst.msk [vmem:[#allocation2 + $0x38] sm:$0xff] %vm272, 0.0
        %281 = vst.msk [vmem:[#allocation2 + $0x40] sm:$0xff] %vm272, 0.0
        %282 = vst.msk [vmem:[#allocation2 + $0x48] sm:$0xff] %vm272, 0.0
        %283 = vst.msk [vmem:[#allocation2 + $0x50] sm:$0xff] %vm272, 0.0
        %284 = vst.msk [vmem:[#allocation2 + $0x58] sm:$0xff] %vm272, 0.0
        %285 = vst.msk [vmem:[#allocation2 + $0x60] sm:$0xff] %vm272, 0.0
        %286 = vst.msk [vmem:[#allocation2 + $0x68] sm:$0xff] %vm272, 0.0
        %287 = vst.msk [vmem:[#allocation2 + $0x70] sm:$0xff] %vm272, 0.0
        %288 = vst.msk [vmem:[#allocation2 + $0x78] sm:$0xff] %vm272, 0.0
        %289 = vst.msk [vmem:[#allocation2 + $0x80] sm:$0xff] %vm272, 0.0
        %290 = vst.msk [vmem:[#allocation2 + $0x88] sm:$0xff] %vm272, 0.0
        %291 = vst.msk [vmem:[#allocation2 + $0x90] sm:$0xff] %vm272, 0.0
        %292 = vst.msk [vmem:[#allocation2 + $0x98] sm:$0xff] %vm272, 0.0
        %293 = vst.msk [vmem:[#allocation2 + $0xa0] sm:$0xff] %vm272, 0.0
        %294 = vst.msk [vmem:[#allocation2 + $0xa8] sm:$0xff] %vm272, 0.0
        %295 = vst.msk [vmem:[#allocation2 + $0xb0] sm:$0xff] %vm272, 0.0
        %296 = vst.msk [vmem:[#allocation2 + $0xb8] sm:$0xff] %vm272, 0.0
        %297 = vst.msk [vmem:[#allocation2 + $0xc0] sm:$0xff] %vm272, 0.0
        %298 = vst.msk [vmem:[#allocation2 + $0xc8] sm:$0xff] %vm272, 0.0
        %299 = vst.msk [vmem:[#allocation2 + $0xd0] sm:$0xff] %vm272, 0.0
        %300 = vst.msk [vmem:[#allocation2 + $0xd8] sm:$0xff] %vm272, 0.0
        %301 = vst.msk [vmem:[#allocation2 + $0xe0] sm:$0xff] %vm272, 0.0
        %302 = vst.msk [vmem:[#allocation2 + $0xe8] sm:$0xff] %vm272, 0.0
        %303 = vst.msk [vmem:[#allocation2 + $0xf0] sm:$0xff] %vm272, 0.0
        %304 = vst.msk [vmem:[#allocation2 + $0xf8] sm:$0xff] %vm272, 0.0
      $region36: #{tpu_custom_call.1} parent=31 // pred_fallthru
        _
      %v305 = vld [vmem:[#allocation2] sm:$0xff]
      %v306 = vld [vmem:[#allocation2 + $0x8] sm:$0xff]
      %v307 = vld [vmem:[#allocation2 + $0x10] sm:$0xff]
      %v308 = vld [vmem:[#allocation2 + $0x18] sm:$0xff]
      %v309 = vld [vmem:[#allocation2 + $0x20] sm:$0xff]
      %v310 = vld [vmem:[#allocation2 + $0x28] sm:$0xff]
      %v311 = vld [vmem:[#allocation2 + $0x30] sm:$0xff]
      %v312 = vld [vmem:[#allocation2 + $0x38] sm:$0xff]
      %v313 = vld [vmem:[#allocation2 + $0x40] sm:$0xff]
      %v314 = vld [vmem:[#allocation2 + $0x48] sm:$0xff]
      %v315 = vld [vmem:[#allocation2 + $0x50] sm:$0xff]
      %v316 = vld [vmem:[#allocation2 + $0x58] sm:$0xff]
      %v317 = vld [vmem:[#allocation2 + $0x60] sm:$0xff]
      %v318 = vld [vmem:[#allocation2 + $0x68] sm:$0xff]
      %v319 = vld [vmem:[#allocation2 + $0x70] sm:$0xff]
      %v320 = vld [vmem:[#allocation2 + $0x78] sm:$0xff]
      %v321 = vld [vmem:[#allocation2 + $0x80] sm:$0xff]
      %v322 = vld [vmem:[#allocation2 + $0x88] sm:$0xff]
      %v323 = vld [vmem:[#allocation2 + $0x90] sm:$0xff]
      %v324 = vld [vmem:[#allocation2 + $0x98] sm:$0xff]
      %v325 = vld [vmem:[#allocation2 + $0xa0] sm:$0xff]
      %v326 = vld [vmem:[#allocation2 + $0xa8] sm:$0xff]
      %v327 = vld [vmem:[#allocation2 + $0xb0] sm:$0xff]
      %v328 = vld [vmem:[#allocation2 + $0xb8] sm:$0xff]
      %v329 = vld [vmem:[#allocation2 + $0xc0] sm:$0xff]
      %v330 = vld [vmem:[#allocation2 + $0xc8] sm:$0xff]
      %v331 = vld [vmem:[#allocation2 + $0xd0] sm:$0xff]
      %v332 = vld [vmem:[#allocation2 + $0xd8] sm:$0xff]
      %v333 = vld [vmem:[#allocation2 + $0xe0] sm:$0xff]
      %v334 = vld [vmem:[#allocation2 + $0xe8] sm:$0xff]
      %v335 = vld [vmem:[#allocation2 + $0xf0] sm:$0xff]
      %v336 = vld [vmem:[#allocation2 + $0xf8] sm:$0xff]
      %v337 = vld [vmem:[%s243] sm:$0xff]
      %v338 = vld [vmem:[%s243 + $0x8] sm:$0xff]
      %v339 = vld [vmem:[%s243 + $0x10] sm:$0xff]
      %v340 = vld [vmem:[%s243 + $0x18] sm:$0xff]
      %v341 = vld [vmem:[%s243 + $0x20] sm:$0xff]
      %v342 = vld [vmem:[%s243 + $0x28] sm:$0xff]
      %v343 = vld [vmem:[%s243 + $0x30] sm:$0xff]
      %v344 = vld [vmem:[%s243 + $0x38] sm:$0xff]
      %v345 = vld [vmem:[%s243 + $0x40] sm:$0xff]
      %v346 = vld [vmem:[%s243 + $0x48] sm:$0xff]
      %v347 = vld [vmem:[%s243 + $0x50] sm:$0xff]
      %v348 = vld [vmem:[%s243 + $0x58] sm:$0xff]
      %v349 = vld [vmem:[%s243 + $0x60] sm:$0xff]
      %v350 = vld [vmem:[%s243 + $0x68] sm:$0xff]
      %v351 = vld [vmem:[%s243 + $0x70] sm:$0xff]
      %v352 = vld [vmem:[%s243 + $0x78] sm:$0xff]
      %v353 = vld [vmem:[%s243 + $0x80] sm:$0xff]
      %v354 = vld [vmem:[%s243 + $0x88] sm:$0xff]
      %v355 = vld [vmem:[%s243 + $0x90] sm:$0xff]
      %v356 = vld [vmem:[%s243 + $0x98] sm:$0xff]
      %v357 = vld [vmem:[%s243 + $0xa0] sm:$0xff]
      %v358 = vld [vmem:[%s243 + $0xa8] sm:$0xff]
      %v359 = vld [vmem:[%s243 + $0xb0] sm:$0xff]
      %v360 = vld [vmem:[%s243 + $0xb8] sm:$0xff]
      %v361 = vld [vmem:[%s243 + $0xc0] sm:$0xff]
      %v362 = vld [vmem:[%s243 + $0xc8] sm:$0xff]
      %v363 = vld [vmem:[%s243 + $0xd0] sm:$0xff]
      %v364 = vld [vmem:[%s243 + $0xd8] sm:$0xff]
      %v365 = vld [vmem:[%s243 + $0xe0] sm:$0xff]
      %v366 = vld [vmem:[%s243 + $0xe8] sm:$0xff]
      %v367 = vld [vmem:[%s243 + $0xf0] sm:$0xff]
      %v368 = vld [vmem:[%s243 + $0xf8] sm:$0xff]
      %v369 = vld [vmem:[%s253] sm:$0xf]
      %v370 = vld [vmem:[%s253 + $0x4] sm:$0xf]
      %v371 = vld [vmem:[%s253 + $0x8] sm:$0xf]
      %v372 = vld [vmem:[%s253 + $0xc] sm:$0xf]
      %v373 = vld [vmem:[%s253 + $0x10] sm:$0xf]
      %v374 = vld [vmem:[%s253 + $0x14] sm:$0xf]
      %v375 = vld [vmem:[%s253 + $0x18] sm:$0xf]
      %v376 = vld [vmem:[%s253 + $0x1c] sm:$0xf]
      %v377 = vld [vmem:[%s253 + $0x20] sm:$0xf]
      %v378 = vld [vmem:[%s253 + $0x24] sm:$0xf]
      %v379 = vld [vmem:[%s253 + $0x28] sm:$0xf]
      %v380 = vld [vmem:[%s253 + $0x2c] sm:$0xf]
      %v381 = vld [vmem:[%s253 + $0x30] sm:$0xf]
      %v382 = vld [vmem:[%s253 + $0x34] sm:$0xf]
      %v383 = vld [vmem:[%s253 + $0x38] sm:$0xf]
      %v384 = vld [vmem:[%s253 + $0x3c] sm:$0xf]
      %v385 = vld [vmem:[%s253 + $0x40] sm:$0xf]
      %v386 = vld [vmem:[%s253 + $0x44] sm:$0xf]
      %v387 = vld [vmem:[%s253 + $0x48] sm:$0xf]
      %v388 = vld [vmem:[%s253 + $0x4c] sm:$0xf]
      %v389 = vld [vmem:[%s253 + $0x50] sm:$0xf]
      %v390 = vld [vmem:[%s253 + $0x54] sm:$0xf]
      %v391 = vld [vmem:[%s253 + $0x58] sm:$0xf]
      %v392 = vld [vmem:[%s253 + $0x5c] sm:$0xf]
      %v425 = vunpack.c.l.b16 %v337
      %v426 = vunpack.c.h.b16 %v337
      %v427 = vunpack.c.l.b16 %v338
      %v428 = vunpack.c.h.b16 %v338
      %v429 = vunpack.c.l.b16 %v339
      %v430 = vunpack.c.h.b16 %v339
      %v431 = vunpack.c.l.b16 %v340
      %v432 = vunpack.c.h.b16 %v340
      %v433 = vunpack.c.l.b16 %v341
      %v434 = vunpack.c.h.b16 %v341
      %v435 = vunpack.c.l.b16 %v342
      %v436 = vunpack.c.h.b16 %v342
      %v437 = vunpack.c.l.b16 %v343
      %v438 = vunpack.c.h.b16 %v343
      %v439 = vunpack.c.l.b16 %v344
      %v440 = vunpack.c.h.b16 %v344
      %v441 = vunpack.c.l.b16 %v345
      %v442 = vunpack.c.h.b16 %v345
      %v443 = vunpack.c.l.b16 %v346
      %v444 = vunpack.c.h.b16 %v346
      %v445 = vunpack.c.l.b16 %v347
      %v446 = vunpack.c.h.b16 %v347
      %v447 = vunpack.c.l.b16 %v348
      %v448 = vunpack.c.h.b16 %v348
      %v449 = vunpack.c.l.b16 %v349
      %v450 = vunpack.c.h.b16 %v349
      %v451 = vunpack.c.l.b16 %v350
      %v452 = vunpack.c.h.b16 %v350
      %v453 = vunpack.c.l.b16 %v351
      %v454 = vunpack.c.h.b16 %v351
      %v455 = vunpack.c.l.b16 %v352
      %v456 = vunpack.c.h.b16 %v352
      %v457 = vunpack.c.l.b16 %v353
      %v458 = vunpack.c.h.b16 %v353
      %v459 = vunpack.c.l.b16 %v354
      %v460 = vunpack.c.h.b16 %v354
      %v461 = vunpack.c.l.b16 %v355
      %v462 = vunpack.c.h.b16 %v355
      %v463 = vunpack.c.l.b16 %v356
      %v464 = vunpack.c.h.b16 %v356
      %v465 = vunpack.c.l.b16 %v357
      %v466 = vunpack.c.h.b16 %v357
      %v467 = vunpack.c.l.b16 %v358
      %v468 = vunpack.c.h.b16 %v358
      %v469 = vunpack.c.l.b16 %v359
      %v470 = vunpack.c.h.b16 %v359
      %v471 = vunpack.c.l.b16 %v360
      %v472 = vunpack.c.h.b16 %v360
      %v473 = vunpack.c.l.b16 %v361
      %v474 = vunpack.c.h.b16 %v361
      %v475 = vunpack.c.l.b16 %v362
      %v476 = vunpack.c.h.b16 %v362
      %v477 = vunpack.c.l.b16 %v363
      %v478 = vunpack.c.h.b16 %v363
      %v479 = vunpack.c.l.b16 %v364
      %v480 = vunpack.c.h.b16 %v364
      %v481 = vunpack.c.l.b16 %v365
      %v482 = vunpack.c.h.b16 %v365
      %v483 = vunpack.c.l.b16 %v366
      %v484 = vunpack.c.h.b16 %v366
      %v485 = vunpack.c.l.b16 %v367
      %v486 = vunpack.c.h.b16 %v367
      %v487 = vunpack.c.l.b16 %v368
      %v488 = vunpack.c.h.b16 %v368
      %v489 = vpack.c.b16 %v427, %v425
      %v490 = vpack.c.b16 %v428, %v426
      %v491 = vpack.c.b16 %v431, %v429
      %v492 = vpack.c.b16 %v432, %v430
      %v493 = vpack.c.b16 %v435, %v433
      %v494 = vpack.c.b16 %v436, %v434
      %v495 = vpack.c.b16 %v439, %v437
      %v496 = vpack.c.b16 %v440, %v438
      %v497 = vpack.c.b16 %v443, %v441
      %v498 = vpack.c.b16 %v444, %v442
      %v499 = vpack.c.b16 %v447, %v445
      %v500 = vpack.c.b16 %v448, %v446
      %v501 = vpack.c.b16 %v451, %v449
      %v502 = vpack.c.b16 %v452, %v450
      %v503 = vpack.c.b16 %v455, %v453
      %v504 = vpack.c.b16 %v456, %v454
      %v505 = vpack.c.b16 %v459, %v457
      %v506 = vpack.c.b16 %v460, %v458
      %v507 = vpack.c.b16 %v463, %v461
      %v508 = vpack.c.b16 %v464, %v462
      %v509 = vpack.c.b16 %v467, %v465
      %v510 = vpack.c.b16 %v468, %v466
      %v511 = vpack.c.b16 %v471, %v469
      %v512 = vpack.c.b16 %v472, %v470
      %v513 = vpack.c.b16 %v475, %v473
      %v514 = vpack.c.b16 %v476, %v474
      %v515 = vpack.c.b16 %v479, %v477
      %v516 = vpack.c.b16 %v480, %v478
      %v517 = vpack.c.b16 %v483, %v481
      %v518 = vpack.c.b16 %v484, %v482
      %v519 = vpack.c.b16 %v487, %v485
      %v520 = vpack.c.b16 %v488, %v486
      %v561 = vunpack.c.l.b16 %v369
      %v562 = vunpack.c.l.b16 %v370
      %v563 = vunpack.c.l.b16 %v371
      %v564 = vunpack.c.l.b16 %v372
      %v565 = vunpack.c.l.b16 %v373
      %v566 = vunpack.c.l.b16 %v374
      %v567 = vunpack.c.l.b16 %v375
      %v568 = vunpack.c.l.b16 %v376
      %v569 = vunpack.c.l.b16 %v377
      %v570 = vunpack.c.l.b16 %v378
      %v571 = vunpack.c.l.b16 %v379
      %v572 = vunpack.c.l.b16 %v380
      %v573 = vunpack.c.l.b16 %v381
      %v574 = vunpack.c.l.b16 %v382
      %v575 = vunpack.c.l.b16 %v383
      %v576 = vunpack.c.l.b16 %v384
      %v577 = vunpack.c.l.b16 %v385
      %v578 = vunpack.c.l.b16 %v386
      %v579 = vunpack.c.l.b16 %v387
      %v580 = vunpack.c.l.b16 %v388
      %v581 = vunpack.c.l.b16 %v389
      %v582 = vunpack.c.l.b16 %v390
      %v583 = vunpack.c.l.b16 %v391
      %v584 = vunpack.c.l.b16 %v392
      %v585 = vpack.c.b16 %v562, %v561
      %v586 = vpack.c.b16 %v564, %v563
      %v587 = vpack.c.b16 %v566, %v565
      %v588 = vpack.c.b16 %v568, %v567
      %v589 = vpack.c.b16 %v570, %v569
      %v590 = vpack.c.b16 %v572, %v571
      %v591 = vpack.c.b16 %v574, %v573
      %v592 = vpack.c.b16 %v576, %v575
      %v593 = vpack.c.b16 %v578, %v577
      %v594 = vpack.c.b16 %v580, %v579
      %v595 = vpack.c.b16 %v582, %v581
      %v596 = vpack.c.b16 %v584, %v583
      %vm609 = vcmask 523264
      %v611 = vsel %vm609, %v490, 0
      %v614 = vsel %vm609, %v492, 0
      %v617 = vsel %vm609, %v494, 0
      %v620 = vsel %vm609, %v496, 0
      %v623 = vsel %vm609, %v498, 0
      %v626 = vsel %vm609, %v500, 0
      %v629 = vsel %vm609, %v502, 0
      %v632 = vsel %vm609, %v504, 0
      %v635 = vsel %vm609, %v506, 0
      %v638 = vsel %vm609, %v508, 0
      %v641 = vsel %vm609, %v510, 0
      %v644 = vsel %vm609, %v512, 0
      %v647 = vsel %vm609, %v514, 0
      %v650 = vsel %vm609, %v516, 0
      %v653 = vsel %vm609, %v518, 0
      %v656 = vsel %vm609, %v520, 0
      %658 = vmatpush.bf16.msra.mxu0 %v592
      %659 = vmatpush.bf16.msra.mxu0 %v591
      %660 = vmatpush.bf16.msra.mxu0 %v590
      %661 = vmatpush.bf16.msra.mxu0 %v589
      %662 = vmatpush.bf16.msra.mxu0 %v588
      %663 = vmatpush.bf16.msra.mxu0 %v587
      %664 = vmatpush.bf16.msra.mxu0 %v586
      %665 = vmatpush.bf16.msra.mxu0 %v585
      %666 = vmatmul.bf16.gmra.mxu0 %v489
      %v667 = vpop.f32.mrf.mxu0
      %v668 = vadd.f32 0.0, %v667
      %v669 = vpop.f32.mrf.mxu0
      %v670 = vadd.f32 0.0, %v669
      %671 = vmatmul.bf16.gmra.mxu0 %v491
      %v672 = vpop.f32.mrf.mxu0
      %v673 = vadd.f32 0.0, %v672
      %v674 = vpop.f32.mrf.mxu0
      %v675 = vadd.f32 0.0, %v674
      %676 = vmatmul.bf16.gmra.mxu0 %v493
      %v677 = vpop.f32.mrf.mxu0
      %v678 = vadd.f32 0.0, %v677
      %v679 = vpop.f32.mrf.mxu0
      %v680 = vadd.f32 0.0, %v679
      %681 = vmatmul.bf16.gmra.mxu0 %v495
      %v682 = vpop.f32.mrf.mxu0
      %v683 = vadd.f32 0.0, %v682
      %v684 = vpop.f32.mrf.mxu0
      %v685 = vadd.f32 0.0, %v684
      %686 = vmatmul.bf16.gmra.mxu0 %v497
      %v687 = vpop.f32.mrf.mxu0
      %v688 = vadd.f32 0.0, %v687
      %v689 = vpop.f32.mrf.mxu0
      %v690 = vadd.f32 0.0, %v689
      %691 = vmatmul.bf16.gmra.mxu0 %v499
      %v692 = vpop.f32.mrf.mxu0
      %v693 = vadd.f32 0.0, %v692
      %v694 = vpop.f32.mrf.mxu0
      %v695 = vadd.f32 0.0, %v694
      %696 = vmatmul.bf16.gmra.mxu0 %v501
      %v697 = vpop.f32.mrf.mxu0
      %v698 = vadd.f32 0.0, %v697
      %v699 = vpop.f32.mrf.mxu0
      %v700 = vadd.f32 0.0, %v699
      %701 = vmatmul.bf16.gmra.mxu0 %v503
      %v702 = vpop.f32.mrf.mxu0
      %v703 = vadd.f32 0.0, %v702
      %v704 = vpop.f32.mrf.mxu0
      %v705 = vadd.f32 0.0, %v704
      %706 = vmatmul.bf16.gmra.mxu0 %v505
      %v707 = vpop.f32.mrf.mxu0
      %v708 = vadd.f32 0.0, %v707
      %v709 = vpop.f32.mrf.mxu0
      %v710 = vadd.f32 0.0, %v709
      %711 = vmatmul.bf16.gmra.mxu0 %v507
      %v712 = vpop.f32.mrf.mxu0
      %v713 = vadd.f32 0.0, %v712
      %v714 = vpop.f32.mrf.mxu0
      %v715 = vadd.f32 0.0, %v714
      %716 = vmatmul.bf16.gmra.mxu0 %v509
      %v717 = vpop.f32.mrf.mxu0
      %v718 = vadd.f32 0.0, %v717
      %v719 = vpop.f32.mrf.mxu0
      %v720 = vadd.f32 0.0, %v719
      %721 = vmatmul.bf16.gmra.mxu0 %v511
      %v722 = vpop.f32.mrf.mxu0
      %v723 = vadd.f32 0.0, %v722
      %v724 = vpop.f32.mrf.mxu0
      %v725 = vadd.f32 0.0, %v724
      %726 = vmatmul.bf16.gmra.mxu0 %v513
      %v727 = vpop.f32.mrf.mxu0
      %v728 = vadd.f32 0.0, %v727
      %v729 = vpop.f32.mrf.mxu0
      %v730 = vadd.f32 0.0, %v729
      %731 = vmatmul.bf16.gmra.mxu0 %v515
      %v732 = vpop.f32.mrf.mxu0
      %v733 = vadd.f32 0.0, %v732
      %v734 = vpop.f32.mrf.mxu0
      %v735 = vadd.f32 0.0, %v734
      %736 = vmatmul.bf16.gmra.mxu0 %v517
      %v737 = vpop.f32.mrf.mxu0
      %v738 = vadd.f32 0.0, %v737
      %v739 = vpop.f32.mrf.mxu0
      %v740 = vadd.f32 0.0, %v739
      %741 = vmatmul.bf16.gmra.mxu0 %v519
      %v742 = vpop.f32.mrf.mxu0
      %v743 = vadd.f32 0.0, %v742
      %v744 = vpop.f32.mrf.mxu0
      %v745 = vadd.f32 0.0, %v744
      %746 = vdwg.mxu0
      %747 = vmatpush.bf16.msra.mxu0 0
      %748 = vmatpush.bf16.msra.mxu0 0
      %749 = vmatpush.bf16.msra.mxu0 0
      %750 = vmatpush.bf16.msra.mxu0 0
      %751 = vmatpush.bf16.msra.mxu0 %v596
      %752 = vmatpush.bf16.msra.mxu0 %v595
      %753 = vmatpush.bf16.msra.mxu0 %v594
      %754 = vmatpush.bf16.msra.mxu0 %v593
      %755 = vmatmul.bf16.gmra.mxu0 %v611
      %v756 = vpop.f32.mrf.mxu0
      %v757 = vadd.f32 %v668, %v756
      %v758 = vpop.f32.mrf.mxu0
      %v759 = vadd.f32 %v670, %v758
      %760 = vmatmul.bf16.gmra.mxu0 %v614
      %v761 = vpop.f32.mrf.mxu0
      %v762 = vadd.f32 %v673, %v761
      %v763 = vpop.f32.mrf.mxu0
      %v764 = vadd.f32 %v675, %v763
      %765 = vmatmul.bf16.gmra.mxu0 %v617
      %v766 = vpop.f32.mrf.mxu0
      %v767 = vadd.f32 %v678, %v766
      %v768 = vpop.f32.mrf.mxu0
      %v769 = vadd.f32 %v680, %v768
      %770 = vmatmul.bf16.gmra.mxu0 %v620
      %v771 = vpop.f32.mrf.mxu0
      %v772 = vadd.f32 %v683, %v771
      %v773 = vpop.f32.mrf.mxu0
      %v774 = vadd.f32 %v685, %v773
      %775 = vmatmul.bf16.gmra.mxu0 %v623
      %v776 = vpop.f32.mrf.mxu0
      %v777 = vadd.f32 %v688, %v776
      %v778 = vpop.f32.mrf.mxu0
      %v779 = vadd.f32 %v690, %v778
      %780 = vmatmul.bf16.gmra.mxu0 %v626
      %v781 = vpop.f32.mrf.mxu0
      %v782 = vadd.f32 %v693, %v781
      %v783 = vpop.f32.mrf.mxu0
      %v784 = vadd.f32 %v695, %v783
      %785 = vmatmul.bf16.gmra.mxu0 %v629
      %v786 = vpop.f32.mrf.mxu0
      %v787 = vadd.f32 %v698, %v786
      %v788 = vpop.f32.mrf.mxu0
      %v789 = vadd.f32 %v700, %v788
      %790 = vmatmul.bf16.gmra.mxu0 %v632
      %v791 = vpop.f32.mrf.mxu0
      %v792 = vadd.f32 %v703, %v791
      %v793 = vpop.f32.mrf.mxu0
      %v794 = vadd.f32 %v705, %v793
      %795 = vmatmul.bf16.gmra.mxu0 %v635
      %v796 = vpop.f32.mrf.mxu0
      %v797 = vadd.f32 %v708, %v796
      %v798 = vpop.f32.mrf.mxu0
      %v799 = vadd.f32 %v710, %v798
      %800 = vmatmul.bf16.gmra.mxu0 %v638
      %v801 = vpop.f32.mrf.mxu0
      %v802 = vadd.f32 %v713, %v801
      %v803 = vpop.f32.mrf.mxu0
      %v804 = vadd.f32 %v715, %v803
      %805 = vmatmul.bf16.gmra.mxu0 %v641
      %v806 = vpop.f32.mrf.mxu0
      %v807 = vadd.f32 %v718, %v806
      %v808 = vpop.f32.mrf.mxu0
      %v809 = vadd.f32 %v720, %v808
      %810 = vmatmul.bf16.gmra.mxu0 %v644
      %v811 = vpop.f32.mrf.mxu0
      %v812 = vadd.f32 %v723, %v811
      %v813 = vpop.f32.mrf.mxu0
      %v814 = vadd.f32 %v725, %v813
      %815 = vmatmul.bf16.gmra.mxu0 %v647
      %v816 = vpop.f32.mrf.mxu0
      %v817 = vadd.f32 %v728, %v816
      %v818 = vpop.f32.mrf.mxu0
      %v819 = vadd.f32 %v730, %v818
      %820 = vmatmul.bf16.gmra.mxu0 %v650
      %v821 = vpop.f32.mrf.mxu0
      %v822 = vadd.f32 %v733, %v821
      %v823 = vpop.f32.mrf.mxu0
      %v824 = vadd.f32 %v735, %v823
      %825 = vmatmul.bf16.gmra.mxu0 %v653
      %v826 = vpop.f32.mrf.mxu0
      %v827 = vadd.f32 %v738, %v826
      %v828 = vpop.f32.mrf.mxu0
      %v829 = vadd.f32 %v740, %v828
      %830 = vmatmul.bf16.gmra.mxu0 %v656
      %v831 = vpop.f32.mrf.mxu0
      %v832 = vadd.f32 %v743, %v831
      %v833 = vpop.f32.mrf.mxu0
      %v834 = vadd.f32 %v745, %v833
      %835 = vdwg.mxu0
      %v836 = vadd.f32 %v305, %v757
      %v837 = vadd.f32 %v306, %v759
      %v838 = vadd.f32 %v307, %v762
      %v839 = vadd.f32 %v308, %v764
      %v840 = vadd.f32 %v309, %v767
      %v841 = vadd.f32 %v310, %v769
      %v842 = vadd.f32 %v311, %v772
      %v843 = vadd.f32 %v312, %v774
      %v844 = vadd.f32 %v313, %v777
      %v845 = vadd.f32 %v314, %v779
      %v846 = vadd.f32 %v315, %v782
      %v847 = vadd.f32 %v316, %v784
      %v848 = vadd.f32 %v317, %v787
      %v849 = vadd.f32 %v318, %v789
      %v850 = vadd.f32 %v319, %v792
      %v851 = vadd.f32 %v320, %v794
      %v852 = vadd.f32 %v321, %v797
      %v853 = vadd.f32 %v322, %v799
      %v854 = vadd.f32 %v323, %v802
      %v855 = vadd.f32 %v324, %v804
      %v856 = vadd.f32 %v325, %v807
      %v857 = vadd.f32 %v326, %v809
      %v858 = vadd.f32 %v327, %v812
      %v859 = vadd.f32 %v328, %v814
      %v860 = vadd.f32 %v329, %v817
      %v861 = vadd.f32 %v330, %v819
      %v862 = vadd.f32 %v331, %v822
      %v863 = vadd.f32 %v332, %v824
      %v864 = vadd.f32 %v333, %v827
      %v865 = vadd.f32 %v334, %v829
      %v866 = vadd.f32 %v335, %v832
      %v867 = vadd.f32 %v336, %v834
      %vm868 = vcmask 261120
      %869 = vst.msk [vmem:[#allocation2] sm:$0xff] %vm868, %v836
      %870 = vst.msk [vmem:[#allocation2 + $0x8] sm:$0xff] %vm868, %v837
      %871 = vst.msk [vmem:[#allocation2 + $0x10] sm:$0xff] %vm868, %v838
      %872 = vst.msk [vmem:[#allocation2 + $0x18] sm:$0xff] %vm868, %v839
      %873 = vst.msk [vmem:[#allocation2 + $0x20] sm:$0xff] %vm868, %v840
      %874 = vst.msk [vmem:[#allocation2 + $0x28] sm:$0xff] %vm868, %v841
      %875 = vst.msk [vmem:[#allocation2 + $0x30] sm:$0xff] %vm868, %v842
      %876 = vst.msk [vmem:[#allocation2 + $0x38] sm:$0xff] %vm868, %v843
      %877 = vst.msk [vmem:[#allocation2 + $0x40] sm:$0xff] %vm868, %v844
      %878 = vst.msk [vmem:[#allocation2 + $0x48] sm:$0xff] %vm868, %v845
      %879 = vst.msk [vmem:[#allocation2 + $0x50] sm:$0xff] %vm868, %v846
      %880 = vst.msk [vmem:[#allocation2 + $0x58] sm:$0xff] %vm868, %v847
      %881 = vst.msk [vmem:[#allocation2 + $0x60] sm:$0xff] %vm868, %v848
      %882 = vst.msk [vmem:[#allocation2 + $0x68] sm:$0xff] %vm868, %v849
      %883 = vst.msk [vmem:[#allocation2 + $0x70] sm:$0xff] %vm868, %v850
      %884 = vst.msk [vmem:[#allocation2 + $0x78] sm:$0xff] %vm868, %v851
      %885 = vst.msk [vmem:[#allocation2 + $0x80] sm:$0xff] %vm868, %v852
      %886 = vst.msk [vmem:[#allocation2 + $0x88] sm:$0xff] %vm868, %v853
      %887 = vst.msk [vmem:[#allocation2 + $0x90] sm:$0xff] %vm868, %v854
      %888 = vst.msk [vmem:[#allocation2 + $0x98] sm:$0xff] %vm868, %v855
      %889 = vst.msk [vmem:[#allocation2 + $0xa0] sm:$0xff] %vm868, %v856
      %890 = vst.msk [vmem:[#allocation2 + $0xa8] sm:$0xff] %vm868, %v857
      %891 = vst.msk [vmem:[#allocation2 + $0xb0] sm:$0xff] %vm868, %v858
      %892 = vst.msk [vmem:[#allocation2 + $0xb8] sm:$0xff] %vm868, %v859
      %893 = vst.msk [vmem:[#allocation2 + $0xc0] sm:$0xff] %vm868, %v860
      %894 = vst.msk [vmem:[#allocation2 + $0xc8] sm:$0xff] %vm868, %v861
      %895 = vst.msk [vmem:[#allocation2 + $0xd0] sm:$0xff] %vm868, %v862
      %896 = vst.msk [vmem:[#allocation2 + $0xd8] sm:$0xff] %vm868, %v863
      %897 = vst.msk [vmem:[#allocation2 + $0xe0] sm:$0xff] %vm868, %v864
      %898 = vst.msk [vmem:[#allocation2 + $0xe8] sm:$0xff] %vm868, %v865
      %899 = vst.msk [vmem:[#allocation2 + $0xf0] sm:$0xff] %vm868, %v866
      %900 = vst.msk [vmem:[#allocation2 + $0xf8] sm:$0xff] %vm868, %v867
      // Predicated region
      $region37: #{tpu_custom_call.1} parent=31 // pred_check
        %p901 = pneg %p268
      $region38: #{tpu_custom_call.1} parent=31 // pred_check_branch
        %903 = sbr.rel (%p901) target = $region40
      $region39: #{tpu_custom_call.1} parent=31 // pred_region
        %v904 = vld [vmem:[#allocation2] sm:$0xff]
        %v905 = vld [vmem:[#allocation2 + $0x8] sm:$0xff]
        %v906 = vld [vmem:[#allocation2 + $0x10] sm:$0xff]
        %v907 = vld [vmem:[#allocation2 + $0x18] sm:$0xff]
        %v908 = vld [vmem:[#allocation2 + $0x20] sm:$0xff]
        %v909 = vld [vmem:[#allocation2 + $0x28] sm:$0xff]
        %v910 = vld [vmem:[#allocation2 + $0x30] sm:$0xff]
        %v911 = vld [vmem:[#allocation2 + $0x38] sm:$0xff]
        %v912 = vld [vmem:[#allocation2 + $0x40] sm:$0xff]
        %v913 = vld [vmem:[#allocation2 + $0x48] sm:$0xff]
        %v914 = vld [vmem:[#allocation2 + $0x50] sm:$0xff]
        %v915 = vld [vmem:[#allocation2 + $0x58] sm:$0xff]
        %v916 = vld [vmem:[#allocation2 + $0x60] sm:$0xff]
        %v917 = vld [vmem:[#allocation2 + $0x68] sm:$0xff]
        %v918 = vld [vmem:[#allocation2 + $0x70] sm:$0xff]
        %v919 = vld [vmem:[#allocation2 + $0x78] sm:$0xff]
        %v920 = vld [vmem:[#allocation2 + $0x80] sm:$0xff]
        %v921 = vld [vmem:[#allocation2 + $0x88] sm:$0xff]
        %v922 = vld [vmem:[#allocation2 + $0x90] sm:$0xff]
        %v923 = vld [vmem:[#allocation2 + $0x98] sm:$0xff]
        %v924 = vld [vmem:[#allocation2 + $0xa0] sm:$0xff]
        %v925 = vld [vmem:[#allocation2 + $0xa8] sm:$0xff]
        %v926 = vld [vmem:[#allocation2 + $0xb0] sm:$0xff]
        %v927 = vld [vmem:[#allocation2 + $0xb8] sm:$0xff]
        %v928 = vld [vmem:[#allocation2 + $0xc0] sm:$0xff]
        %v929 = vld [vmem:[#allocation2 + $0xc8] sm:$0xff]
        %v930 = vld [vmem:[#allocation2 + $0xd0] sm:$0xff]
        %v931 = vld [vmem:[#allocation2 + $0xd8] sm:$0xff]
        %v932 = vld [vmem:[#allocation2 + $0xe0] sm:$0xff]
        %v933 = vld [vmem:[#allocation2 + $0xe8] sm:$0xff]
        %v934 = vld [vmem:[#allocation2 + $0xf0] sm:$0xff]
        %v935 = vld [vmem:[#allocation2 + $0xf8] sm:$0xff]
        %v936 = vld [vmem:[%s257] sm:$0x1]
        %v938 = vperm.slane %v936, 0
        %v940 = vadd.f32 %v904, %v938
        %v941 = vadd.f32 %v905, %v938
        %v942 = vadd.f32 %v906, %v938
        %v943 = vadd.f32 %v907, %v938
        %v944 = vadd.f32 %v908, %v938
        %v945 = vadd.f32 %v909, %v938
        %v946 = vadd.f32 %v910, %v938
        %v947 = vadd.f32 %v911, %v938
        %v948 = vadd.f32 %v912, %v938
        %v949 = vadd.f32 %v913, %v938
        %v950 = vadd.f32 %v914, %v938
        %v951 = vadd.f32 %v915, %v938
        %v952 = vadd.f32 %v916, %v938
        %v953 = vadd.f32 %v917, %v938
        %v954 = vadd.f32 %v918, %v938
        %v955 = vadd.f32 %v919, %v938
        %v956 = vadd.f32 %v920, %v938
        %v957 = vadd.f32 %v921, %v938
        %v958 = vadd.f32 %v922, %v938
        %v959 = vadd.f32 %v923, %v938
        %v960 = vadd.f32 %v924, %v938
        %v961 = vadd.f32 %v925, %v938
        %v962 = vadd.f32 %v926, %v938
        %v963 = vadd.f32 %v927, %v938
        %v964 = vadd.f32 %v928, %v938
        %v965 = vadd.f32 %v929, %v938
        %v966 = vadd.f32 %v930, %v938
        %v967 = vadd.f32 %v931, %v938
        %v968 = vadd.f32 %v932, %v938
        %v969 = vadd.f32 %v933, %v938
        %v970 = vadd.f32 %v934, %v938
        %v971 = vadd.f32 %v935, %v938
        %vm972 = vcmp.ge.f32.partialorder %v940, 0.0
        %vm973 = vcmp.ge.f32.partialorder %v941, 0.0
        %vm974 = vcmp.ge.f32.partialorder %v942, 0.0
        %vm975 = vcmp.ge.f32.partialorder %v943, 0.0
        %vm976 = vcmp.ge.f32.partialorder %v944, 0.0
        %vm977 = vcmp.ge.f32.partialorder %v945, 0.0
        %vm978 = vcmp.ge.f32.partialorder %v946, 0.0
        %vm979 = vcmp.ge.f32.partialorder %v947, 0.0
        %vm980 = vcmp.ge.f32.partialorder %v948, 0.0
        %vm981 = vcmp.ge.f32.partialorder %v949, 0.0
        %vm982 = vcmp.ge.f32.partialorder %v950, 0.0
        %vm983 = vcmp.ge.f32.partialorder %v951, 0.0
        %vm984 = vcmp.ge.f32.partialorder %v952, 0.0
        %vm985 = vcmp.ge.f32.partialorder %v953, 0.0
        %vm986 = vcmp.ge.f32.partialorder %v954, 0.0
        %vm987 = vcmp.ge.f32.partialorder %v955, 0.0
        %vm988 = vcmp.ge.f32.partialorder %v956, 0.0
        %vm989 = vcmp.ge.f32.partialorder %v957, 0.0
        %vm990 = vcmp.ge.f32.partialorder %v958, 0.0
        %vm991 = vcmp.ge.f32.partialorder %v959, 0.0
        %vm992 = vcmp.ge.f32.partialorder %v960, 0.0
        %vm993 = vcmp.ge.f32.partialorder %v961, 0.0
        %vm994 = vcmp.ge.f32.partialorder %v962, 0.0
        %vm995 = vcmp.ge.f32.partialorder %v963, 0.0
        %vm996 = vcmp.ge.f32.partialorder %v964, 0.0
        %vm997 = vcmp.ge.f32.partialorder %v965, 0.0
        %vm998 = vcmp.ge.f32.partialorder %v966, 0.0
        %vm999 = vcmp.ge.f32.partialorder %v967, 0.0
        %vm1000 = vcmp.ge.f32.partialorder %v968, 0.0
        %vm1001 = vcmp.ge.f32.partialorder %v969, 0.0
        %vm1002 = vcmp.ge.f32.partialorder %v970, 0.0
        %vm1003 = vcmp.ge.f32.partialorder %v971, 0.0
        %v1004 = vmul.f32 %v940, 0.2
        %v1005 = vmul.f32 %v941, 0.2
        %v1006 = vmul.f32 %v942, 0.2
        %v1007 = vmul.f32 %v943, 0.2
        %v1008 = vmul.f32 %v944, 0.2
        %v1009 = vmul.f32 %v945, 0.2
        %v1010 = vmul.f32 %v946, 0.2
        %v1011 = vmul.f32 %v947, 0.2
        %v1012 = vmul.f32 %v948, 0.2
        %v1013 = vmul.f32 %v949, 0.2
        %v1014 = vmul.f32 %v950, 0.2
        %v1015 = vmul.f32 %v951, 0.2
        %v1016 = vmul.f32 %v952, 0.2
        %v1017 = vmul.f32 %v953, 0.2
        %v1018 = vmul.f32 %v954, 0.2
        %v1019 = vmul.f32 %v955, 0.2
        %v1020 = vmul.f32 %v956, 0.2
        %v1021 = vmul.f32 %v957, 0.2
        %v1022 = vmul.f32 %v958, 0.2
        %v1023 = vmul.f32 %v959, 0.2
        %v1024 = vmul.f32 %v960, 0.2
        %v1025 = vmul.f32 %v961, 0.2
        %v1026 = vmul.f32 %v962, 0.2
        %v1027 = vmul.f32 %v963, 0.2
        %v1028 = vmul.f32 %v964, 0.2
        %v1029 = vmul.f32 %v965, 0.2
        %v1030 = vmul.f32 %v966, 0.2
        %v1031 = vmul.f32 %v967, 0.2
        %v1032 = vmul.f32 %v968, 0.2
        %v1033 = vmul.f32 %v969, 0.2
        %v1034 = vmul.f32 %v970, 0.2
        %v1035 = vmul.f32 %v971, 0.2
        %v1036 = vsel %vm972, %v940, %v1004
        %v1037 = vsel %vm973, %v941, %v1005
        %v1038 = vsel %vm974, %v942, %v1006
        %v1039 = vsel %vm975, %v943, %v1007
        %v1040 = vsel %vm976, %v944, %v1008
        %v1041 = vsel %vm977, %v945, %v1009
        %v1042 = vsel %vm978, %v946, %v1010
        %v1043 = vsel %vm979, %v947, %v1011
        %v1044 = vsel %vm980, %v948, %v1012
        %v1045 = vsel %vm981, %v949, %v1013
        %v1046 = vsel %vm982, %v950, %v1014
        %v1047 = vsel %vm983, %v951, %v1015
        %v1048 = vsel %vm984, %v952, %v1016
        %v1049 = vsel %vm985, %v953, %v1017
        %v1050 = vsel %vm986, %v954, %v1018
        %v1051 = vsel %vm987, %v955, %v1019
        %v1052 = vsel %vm988, %v956, %v1020
        %v1053 = vsel %vm989, %v957, %v1021
        %v1054 = vsel %vm990, %v958, %v1022
        %v1055 = vsel %vm991, %v959, %v1023
        %v1056 = vsel %vm992, %v960, %v1024
        %v1057 = vsel %vm993, %v961, %v1025
        %v1058 = vsel %vm994, %v962, %v1026
        %v1059 = vsel %vm995, %v963, %v1027
        %v1060 = vsel %vm996, %v964, %v1028
        %v1061 = vsel %vm997, %v965, %v1029
        %v1062 = vsel %vm998, %v966, %v1030
        %v1063 = vsel %vm999, %v967, %v1031
        %v1064 = vsel %vm1000, %v968, %v1032
        %v1065 = vsel %vm1001, %v969, %v1033
        %v1066 = vsel %vm1002, %v970, %v1034
        %v1067 = vsel %vm1003, %v971, %v1035
        %1068 = vst.msk [vmem:[%s265] sm:$0xff] %vm868, %v1036
        %1069 = vst.msk [vmem:[%s265 + $0x8] sm:$0xff] %vm868, %v1037
        %1070 = vst.msk [vmem:[%s265 + $0x10] sm:$0xff] %vm868, %v1038
        %1071 = vst.msk [vmem:[%s265 + $0x18] sm:$0xff] %vm868, %v1039
        %1072 = vst.msk [vmem:[%s265 + $0x20] sm:$0xff] %vm868, %v1040
        %1073 = vst.msk [vmem:[%s265 + $0x28] sm:$0xff] %vm868, %v1041
        %1074 = vst.msk [vmem:[%s265 + $0x30] sm:$0xff] %vm868, %v1042
        %1075 = vst.msk [vmem:[%s265 + $0x38] sm:$0xff] %vm868, %v1043
        %1076 = vst.msk [vmem:[%s265 + $0x40] sm:$0xff] %vm868, %v1044
        %1077 = vst.msk [vmem:[%s265 + $0x48] sm:$0xff] %vm868, %v1045
        %1078 = vst.msk [vmem:[%s265 + $0x50] sm:$0xff] %vm868, %v1046
        %1079 = vst.msk [vmem:[%s265 + $0x58] sm:$0xff] %vm868, %v1047
        %1080 = vst.msk [vmem:[%s265 + $0x60] sm:$0xff] %vm868, %v1048
        %1081 = vst.msk [vmem:[%s265 + $0x68] sm:$0xff] %vm868, %v1049
        %1082 = vst.msk [vmem:[%s265 + $0x70] sm:$0xff] %vm868, %v1050
        %1083 = vst.msk [vmem:[%s265 + $0x78] sm:$0xff] %vm868, %v1051
        %1084 = vst.msk [vmem:[%s265 + $0x80] sm:$0xff] %vm868, %v1052
        %1085 = vst.msk [vmem:[%s265 + $0x88] sm:$0xff] %vm868, %v1053
        %1086 = vst.msk [vmem:[%s265 + $0x90] sm:$0xff] %vm868, %v1054
        %1087 = vst.msk [vmem:[%s265 + $0x98] sm:$0xff] %vm868, %v1055
        %1088 = vst.msk [vmem:[%s265 + $0xa0] sm:$0xff] %vm868, %v1056
        %1089 = vst.msk [vmem:[%s265 + $0xa8] sm:$0xff] %vm868, %v1057
        %1090 = vst.msk [vmem:[%s265 + $0xb0] sm:$0xff] %vm868, %v1058
        %1091 = vst.msk [vmem:[%s265 + $0xb8] sm:$0xff] %vm868, %v1059
        %1092 = vst.msk [vmem:[%s265 + $0xc0] sm:$0xff] %vm868, %v1060
        %1093 = vst.msk [vmem:[%s265 + $0xc8] sm:$0xff] %vm868, %v1061
        %1094 = vst.msk [vmem:[%s265 + $0xd0] sm:$0xff] %vm868, %v1062
        %1095 = vst.msk [vmem:[%s265 + $0xd8] sm:$0xff] %vm868, %v1063
        %1096 = vst.msk [vmem:[%s265 + $0xe0] sm:$0xff] %vm868, %v1064
        %1097 = vst.msk [vmem:[%s265 + $0xe8] sm:$0xff] %vm868, %v1065
        %1098 = vst.msk [vmem:[%s265 + $0xf0] sm:$0xff] %vm868, %v1066
        %1099 = vst.msk [vmem:[%s265 + $0xf8] sm:$0xff] %vm868, %v1067
      $region40: #{tpu_custom_call.1} parent=31 // pred_fallthru
        _
      %s1100 = smul.u32 32, %s19
      %p1101 = scmp.lt.s32.totalorder %s1100, 255
      %s1102 = scalar_select %p1101, %s1100, 255
      %p1103 = scmp.lt.s32.totalorder %s20, 0
      %s1104 = scalar_select %p1103, %s20, 0
      %s1105 = sadd.s32 %s1104, %s1102
      %s1106 = smul.addr %s1105, 8
      %s1107 = scalar_lea.vmem %s3, %s1106
      // Predicated region
      $region41: #{tpu_custom_call.1} parent=31 // pred_check
        %p1108 = pneg %p135
      $region42: #{tpu_custom_call.1} parent=31 // pred_check_branch
        %1110 = sbr.rel (%p1108) target = $region44
      $region43: #{tpu_custom_call.1} parent=31 // pred_region
        %s1111 = smul.u32 32, %s19
      $region44: #{tpu_custom_call.1} parent=31 // pred_fallthru
        _
    $region32: #{tpu_custom_call.1} parent=5 // pred_fallthru
      _
    %p1112 = scmp.le.s32.totalorder 2, %s9
    // Predicated region
    $region45: #{tpu_custom_call.1} parent=5 // pred_check
      %p1113 = pneg %p1112
    $region46: #{tpu_custom_call.1} parent=5 // pred_check_branch
      %1115 = sbr.rel (%p1113) target = $region48
    $region47: #{tpu_custom_call.1} parent=5 // pred_region
      %s1116 = ssub.s32 %s9, 2
      // Predicated region
      $region49: #{tpu_custom_call.1} parent=47 // pred_check
        %p1117 = pneg %p141
      $region50: #{tpu_custom_call.1} parent=47 // pred_check_branch
        %1119 = sbr.rel (%p1117) target = $region52
      $region51: #{tpu_custom_call.1} parent=47 // pred_region
        %s1120 = smul.u32 32, %s22
        %p1121 = scmp.lt.s32.totalorder %s1120, 255
        %s1122 = scalar_select %p1121, %s1120, 255
        %p1123 = scmp.lt.s32.totalorder %s23, 0
        %s1124 = scalar_select %p1123, %s23, 0
        %s1125 = sadd.s32 %s1124, %s1122
        %s1126 = smul.addr %s1125, 8
        %s1127 = scalar_lea.vmem %s3, %s1126
      $region52: #{tpu_custom_call.1} parent=47 // pred_fallthru
        _
    $region48: #{tpu_custom_call.1} parent=5 // pred_fallthru
      _
  $region6: #{tpu_custom_call.1} parent=0 // loop_footer
    %s13 = sadd.s32 1, %s9
  $region7: #{tpu_custom_call.1} parent=0 // loop_footer_branch
    %8 = sbr.rel target = $region3
  $region8: #{tpu_custom_call.1} parent=0 // loop_exit
    _

</llo_original>
